<compile_context>
chip_gen: v7x
topology: tpu7x:2x2x1
jax: 0.10.0
libtpu: 0.0.40
codegen_flags: <defaults>
</compile_context>

<pallas_src>
import jax
import jax.numpy as jnp
from jax.experimental import pallas as pl
from jax.experimental.pallas import tpu as pltpu


def _both_kernel(x_ref, w_ref, b_ref, o_ref, acc_ref):
    """Grid = (batch_tiles, seq_tiles); the seq axis (axis 1) is the reduction."""
    j = pl.program_id(1)

    @pl.when(j == 0)
    def _():
        acc_ref[...] = jnp.zeros_like(acc_ref)

    # f32 token-sum over this (lane-folded) sequence tile.
    acc_ref[...] += jnp.sum(x_ref[...].astype(jnp.float32), axis=1)

    @pl.when(j == pl.num_programs(1) - 1)
    def _():
        # 1/S is pre-folded into w_ref and the F lane-folds are summed by the
        # stacked weight, so this single f32 MXU matmul yields the head logits.
        logits = jnp.dot(acc_ref[...], w_ref[...],
                         preferred_element_type=jnp.float32) + b_ref[...]
        # Softmax over the lane-dense (padded) class dim; padded classes carry
        # a -1e30 bias -> probability exactly 0.  Exact divide (once per tile).
        m = jnp.max(logits, axis=-1, keepdims=True)
        e = jnp.exp(logits - m)
        denom = jnp.sum(e, axis=-1, keepdims=True)
        o_ref[...] = (e / denom).astype(o_ref.dtype)


def _pick_tile(dim, cap, mult):
    """Largest divisor of `dim` that is <= cap and is either a multiple of
    `mult` or the full dim (Pallas second-to-last block-dim rule)."""
    cap = max(1, min(int(dim), int(cap)))
    if dim <= cap:
        return dim
    for t in range(cap, 0, -1):
        if dim % t == 0 and (t % mult == 0 or t == dim):
            return t
    return dim  # fall back to a single (un-tiled) block


def both_forward(x, enc_w, enc_b, head_w_t, head_b, *,
                 block_b=None, block_s=None, stream_bf16=False):
    """softmax(Linear(mean_s(encoder(x)))) with the frozen linear encoder and
    head pre-folded host-side into a single [F*Din, C] matrix."""
    B, S, Din = x.shape
    C = head_w_t.shape[1]

    # ---- host-side one-time fold (weights are frozen) ----
    w_fused = (enc_w @ head_w_t) * (1.0 / S)          # [Din, C], 1/S folded in
    b_fused = enc_b @ head_w_t + head_b               # [1,  C]

    # ---- lane folding: pack F tokens into the 128-lane feature dimension ----
    if Din < 128 and 128 % Din == 0 and S % (128 // Din) == 0:
        F = 128 // Din
    else:
        F = 1
    Dfold = F * Din
    Sf = S // F
    x_folded = x.reshape(B, Sf, Dfold)                # metadata-only reshape
    w_stack = jnp.tile(w_fused, (F, 1))               # [Dfold, C]; matmul sums folds

    # Lane-dense class dim: pad C up to a multiple of 128.  Padded columns get
    # zero weight and -1e30 bias -> softmax probability exactly 0.
    c_pad = ((C + 127) // 128) * 128
    w_pad = jnp.zeros((Dfold, c_pad), jnp.float32).at[:, :C].set(w_stack)
    b_pad = jnp.full((1, c_pad), -1e30, jnp.float32).at[:, :C].set(b_fused)

    if stream_bf16:                                   # optional ~2x HBM win
        x_folded = x_folded.astype(jnp.bfloat16)
    x_dsize = jnp.dtype(x_folded.dtype).itemsize
    s_mult = 16 if x_dsize == 2 else 8                # sublane multiple for x block

    # ---- generation-aware VMEM budget / tile defaults ----
    try:
        vmem_cap = int(pltpu.get_tpu_info().vmem_capacity_bytes)
    except Exception:
        vmem_cap = 64 * 1024 * 1024                   # conservative (v7x per-TC)
    vmem_limit = min(int(vmem_cap * 0.85), 100 * 1024 * 1024)

    if block_b is None:
        tb_cap = 256
        if B >= 16:
            tb_cap = min(tb_cap, B // 2)  # >=2 batch tiles -> v7x uses both TCs
        tb = _pick_tile(B, tb_cap, 8)
    else:
        tb = block_b

    if block_s is None:
        fixed = (tb * Dfold * 4            # f32 token-sum accumulator
                 + 2 * tb * c_pad * 4      # double-buffered f32 output tile
                 + 2 * Dfold * c_pad * 4   # fused weight (double-buffered)
                 + 2 * c_pad * 4           # fused bias
                 + (2 << 20))              # compiler scratch headroom
        ts_cap = max(8, (vmem_limit - fixed) // (2 * tb * Dfold * x_dsize))
        ts = _pick_tile(Sf, ts_cap, s_mult)
    else:
        ts = block_s

    assert B % tb == 0 and Sf % ts == 0, "tiles must divide (B, S // F)"
    grid = (B // tb, Sf // ts)

    out_padded = pl.pallas_call(
        _both_kernel,
        out_shape=jax.ShapeDtypeStruct((B, c_pad), jnp.float32),  # pinned f32
        grid=grid,
        in_specs=[
            pl.BlockSpec((tb, ts, Dfold), lambda i, j: (i, j, 0)),   # streamed x
            pl.BlockSpec((Dfold, c_pad), lambda i, j: (0, 0)),       # fused weight
            pl.BlockSpec((1, c_pad), lambda i, j: (0, 0)),           # fused bias
        ],
        out_specs=pl.BlockSpec((tb, c_pad), lambda i, j: (i, 0)),
        scratch_shapes=[pltpu.VMEM((tb, Dfold), jnp.float32)],       # token-sum acc
        compiler_params=pltpu.CompilerParams(
            dimension_semantics=("parallel", "arbitrary"),
            vmem_limit_bytes=vmem_limit),
    )(x_folded, w_pad, b_pad)

    # Glue: drop the lane padding on the class dim.
    return out_padded[:, :C]


if __name__ == "__main__":
    # Small shapes consistent with the module's forward.
    B, S, D_IN = 2, 8, 32          # encoder input tokens
    EMBED_DIMS = 32                # encoder output / head input_size
    NUM_CLASSES = 10

    key = jax.random.PRNGKey(0)
    kx, ke_w, ke_b, kh_w = jax.random.split(key, 4)

    x = jax.random.normal(kx, (B, S, D_IN), dtype=jnp.float32)

    # Frozen encoder parameters (deterministic init).
    enc_w = jax.random.normal(ke_w, (D_IN, EMBED_DIMS), dtype=jnp.float32) * 0.05
    enc_b = jax.random.normal(ke_b, (1, EMBED_DIMS), dtype=jnp.float32) * 0.01

    # Head: nn.Linear(EMBED_DIMS, num_classes); weight ~ N(0, 0.1), bias = 0.
    # PyTorch stores weight as [C, E]; pre-transpose to [E, C] (glue only).
    head_w = jax.random.normal(kh_w, (NUM_CLASSES, EMBED_DIMS), dtype=jnp.float32) * 0.1
    head_w_t = head_w.T                                  # [E, C]
    head_b = jnp.zeros((1, NUM_CLASSES), dtype=jnp.float32)

    out = both_forward(x, enc_w, enc_b, head_w_t, head_b)
    out = jax.block_until_ready(out)

    # Pure-JAX f32 reference (same semantics as the PyTorch forward).
    h_ref = jnp.einsum("bsd,de->bse", x, enc_w) + enc_b
    pooled_ref = jnp.mean(h_ref, axis=1)
    logits_ref = pooled_ref @ head_w_t + head_b
    probs_ref = jax.nn.softmax(logits_ref, axis=1)

    assert out.shape == (B, NUM_CLASSES)
    # Everything stays f32 (exact divide, f32 matmul) -> tight tolerance.
    assert jnp.allclose(out, probs_ref, atol=1e-4), float(
        jnp.max(jnp.abs(out - probs_ref)))

    print("KERNEL_OK")
</pallas_src>

<mosaic_0001>
module attributes {stable_mosaic.version = 11 : i64} {
  func.func @_both_kernel(%arg0: i32, %arg1: i32, %arg2: memref<2x2x128xf32, #tpu.memory_space<vmem>>, %arg3: memref<128x128xf32, #tpu.memory_space<vmem>>, %arg4: memref<1x128xf32, #tpu.memory_space<vmem>>, %arg5: memref<2x128xf32, #tpu.memory_space<vmem>>, %arg6: memref<2x128xf32, #tpu.memory_space<vmem>>) attributes {dimension_semantics = [#tpu.dimension_semantics<parallel>, #tpu.dimension_semantics<arbitrary>], iteration_bounds = array<i64: 1, 1>, scalar_prefetch = 0 : i64, scratch_operands = 1 : i64, tpu.core_type = #tpu.core_type<tc>, window_params = [{transform_indices = @transform_0, window_bounds = array<i64: 2, 2, 128>}, {pipeline_mode = #tpu.pipeline_mode<synchronous>, transform_indices = @transform_1, window_bounds = array<i64: 128, 128>}, {pipeline_mode = #tpu.pipeline_mode<synchronous>, transform_indices = @transform_2, window_bounds = array<i64: 1, 128>}, {transform_indices = @transform_3, window_bounds = array<i64: 2, 128>}]} {
    %c0_i32 = arith.constant 0 : i32
    %0 = arith.cmpi eq, %arg1, %c0_i32 : i32
    %1 = arith.extui %0 : i1 to i32
    %c0_i32_0 = arith.constant 0 : i32
    %2 = arith.cmpi ne, %1, %c0_i32_0 : i32
    scf.if %2 {
      %cst_9 = arith.constant 0.000000e+00 : f32
      %11 = vector.broadcast %cst_9 : f32 to vector<2x128xf32>
      %c0_10 = arith.constant 0 : index
      %c0_11 = arith.constant 0 : index
      %12 = vector.load %arg6[%c0_10, %c0_11] : memref<2x128xf32, #tpu.memory_space<vmem>>, vector<2x128xf32>
      tpu.vector_store %arg6[%c0_10, %c0_11], %11 {strides = array<i32>} : memref<2x128xf32, #tpu.memory_space<vmem>>, vector<2x128xf32>,
    } else {
    }
    %c0 = arith.constant 0 : index
    %c0_1 = arith.constant 0 : index
    %3 = vector.load %arg6[%c0, %c0_1] : memref<2x128xf32, #tpu.memory_space<vmem>>, vector<2x128xf32>
    %c0_2 = arith.constant 0 : index
    %c0_3 = arith.constant 0 : index
    %c0_4 = arith.constant 0 : index
    %4 = vector.load %arg2[%c0_2, %c0_3, %c0_4] : memref<2x2x128xf32, #tpu.memory_space<vmem>>, vector<2x2x128xf32>
    %cst = arith.constant dense<0.000000e+00> : vector<2x128xf32>
    %5 = vector.multi_reduction <add>, %4, %cst [1] : vector<2x2x128xf32> to vector<2x128xf32>
    %6 = arith.addf %3, %5 : vector<2x128xf32>
    %c0_5 = arith.constant 0 : index
    %c0_6 = arith.constant 0 : index
    %7 = vector.load %arg6[%c0_5, %c0_6] : memref<2x128xf32, #tpu.memory_space<vmem>>, vector<2x128xf32>
    tpu.vector_store %arg6[%c0_5, %c0_6], %6 {strides = array<i32>} : memref<2x128xf32, #tpu.memory_space<vmem>>, vector<2x128xf32>,
    %c0_i32_7 = arith.constant 0 : i32
    %8 = arith.cmpi eq, %arg1, %c0_i32_7 : i32
    %9 = arith.extui %8 : i1 to i32
    %c0_i32_8 = arith.constant 0 : i32
    %10 = arith.cmpi ne, %9, %c0_i32_8 : i32
    scf.if %10 {
      %c0_9 = arith.constant 0 : index
      %c0_10 = arith.constant 0 : index
      %11 = vector.load %arg6[%c0_9, %c0_10] : memref<2x128xf32, #tpu.memory_space<vmem>>, vector<2x128xf32>
      %c0_11 = arith.constant 0 : index
      %c0_12 = arith.constant 0 : index
      %12 = vector.load %arg3[%c0_11, %c0_12] : memref<128x128xf32, #tpu.memory_space<vmem>>, vector<128x128xf32>
      %cst_13 = arith.constant dense<0.000000e+00> : vector<2x128xf32>
      %13 = tpu.matmul %11, %12, %cst_13 {dimension_numbers = #tpu.dot_dimension_numbers<[1], [0], [0], [1], [0, 0, 1, 1], [], []>} : vector<2x128xf32>, vector<128x128xf32>, vector<2x128xf32> -> vector<2x128xf32>
      %c0_14 = arith.constant 0 : index
      %c0_15 = arith.constant 0 : index
      %14 = vector.load %arg4[%c0_14, %c0_15] : memref<1x128xf32, #tpu.memory_space<vmem>>, vector<1x128xf32>
      %15 = vector.broadcast %14 : vector<1x128xf32> to vector<2x128xf32>
      %16 = arith.addf %13, %15 : vector<2x128xf32>
      %cst_16 = arith.constant dense<0xFF800000> : vector<2xf32>
      %17 = vector.multi_reduction <maximumf>, %16, %cst_16 [1] : vector<2x128xf32> to vector<2xf32>
      %18 = vector.shape_cast %17 : vector<2xf32> to vector<2x1xf32>
      %19 = vector.broadcast %18 : vector<2x1xf32> to vector<2x128xf32>
      %20 = arith.subf %16, %19 : vector<2x128xf32>
      %21 = math.exp %20 : vector<2x128xf32>
      %cst_17 = arith.constant dense<0.000000e+00> : vector<2xf32>
      %22 = vector.multi_reduction <add>, %21, %cst_17 [1] : vector<2x128xf32> to vector<2xf32>
      %23 = vector.shape_cast %22 : vector<2xf32> to vector<2x1xf32>
      %24 = vector.broadcast %23 : vector<2x1xf32> to vector<2x128xf32>
      %25 = arith.divf %21, %24 : vector<2x128xf32>
      %c0_18 = arith.constant 0 : index
      %c0_19 = arith.constant 0 : index
      %26 = vector.load %arg5[%c0_18, %c0_19] : memref<2x128xf32, #tpu.memory_space<vmem>>, vector<2x128xf32>
      tpu.vector_store %arg5[%c0_18, %c0_19], %25 {strides = array<i32>} : memref<2x128xf32, #tpu.memory_space<vmem>>, vector<2x128xf32>,
    } else {
    }
    return
  }
  func.func @transform_0(%arg0: i32, %arg1: i32) -> (i32, i32, i32) {
    %c0_i32 = arith.constant 0 : i32
    %c0_i32_0 = arith.constant 0 : i32
    return %arg0, %arg1, %c0_i32 : i32, i32, i32
  }
  func.func @transform_1(%arg0: i32, %arg1: i32) -> (i32, i32) {
    %c0_i32 = arith.constant 0 : i32
    %c0_i32_0 = arith.constant 0 : i32
    %c0_i32_1 = arith.constant 0 : i32
    return %c0_i32, %c0_i32_0 : i32, i32
  }
  func.func @transform_2(%arg0: i32, %arg1: i32) -> (i32, i32) {
    %c0_i32 = arith.constant 0 : i32
    %c0_i32_0 = arith.constant 0 : i32
    %c0_i32_1 = arith.constant 0 : i32
    return %c0_i32, %c0_i32_0 : i32, i32
  }
  func.func @transform_3(%arg0: i32, %arg1: i32) -> (i32, i32) {
    %c0_i32 = arith.constant 0 : i32
    %c0_i32_0 = arith.constant 0 : i32
    return %arg0, %c0_i32 : i32, i32
  }
}

</mosaic_0001>

<llo_original>
// kernel: tpu_custom_call.1
$region0: #{tpu_custom_call.1}
  #allocation0 [shape = 'u32[]', space=smem, size = 0x4, offset = 0x4, fixed_abs, tag = 'smem constant byte address 0x4 - core index']
  #allocation1 [shape = 'u32[144,128]{1,0:T(1,128)}', space=vmem, size = 0x12000, scoped, tag = 'internal scratch']
  #allocation2 [shape = 'f32[2,128]{1,0:T(2,128)}', space=vmem, size = 0x400, scoped, tag = 'scratch operand']
  %s0 = inlined_call_operand.hbm [shape: f32[2,2,128], index: 0, kind: input, shape index: {}]
  %s1 = inlined_call_operand.hbm [shape: f32[128,128], index: 1, kind: input, shape index: {}]
  %s2 = inlined_call_operand.vmem [shape: f32[1,128], index: 2, kind: input, shape index: {}]
  %s3 = inlined_call_operand.hbm [shape: f32[2,128], index: 3, kind: output, shape index: {}]
  %s4 = sld [smem:[#allocation0]]
  $region38: #{tpu_custom_call.1} parent=0
    _
  %s6 = ssub.s32 1, %s4
  %s7 = scalar_select 0, %s6, %s4
  $region1: #{tpu_custom_call.1} parent=0
    #allocation3 [shape = 'u8[2048]{0}', space=vmem, size = 0x800, scoped, tag = 'input window, operand 0, single buffered']
    #allocation4 [shape = 's32[1]{0}', space=sflag, size = 0x4, scoped, tag = 'scoped memory for tpu_custom_call.1']
    #allocation5 [shape = 's32[1]{0}', space=sflag, size = 0x4, scoped, tag = 'scoped memory for tpu_custom_call.1']
    #allocation6 [shape = 'u8[65536]{0}', space=vmem, size = 0x10000, scoped, tag = 'input window, operand 1, single buffered']
    #allocation7 [shape = 's32[1]{0}', space=sflag, size = 0x4, scoped, tag = 'scoped memory for tpu_custom_call.1']
    #allocation8 [shape = 'u8[1024]{0}', space=vmem, size = 0x400, scoped, tag = 'output window, operand 0, single buffered']
    %8 = vsyncpa [#allocation4], 0
    %9 = vsyncpa [#allocation7], 0
    %10 = vsyncpa [#allocation5], 0
    // Predicated region
    $region2: #{tpu_custom_call.1} parent=1 // pred_check
      _
    $region3: #{tpu_custom_call.1} parent=1 // pred_check_branch
      %12 = sbr.rel (0) target = $region5
    $region4: #{tpu_custom_call.1} parent=1 // pred_region
      %s14 = ssub.s32 64, 64
      %15 = vsyncadd [#allocation4], %s14
      %s16 = sshll.u32 [#allocation3], 4
      %s17 = int_to_ptr.vmem [resolvable:$true] %s16
      %22 = dma.hbm_to_vmem [thread:$0]  %s0, 64, %s17, [#allocation4], 32, 32, 2
    $region5: #{tpu_custom_call.1} parent=1 // pred_fallthru
      _
    // Predicated region
    $region6: #{tpu_custom_call.1} parent=1 // pred_check
      _
    $region7: #{tpu_custom_call.1} parent=1 // pred_check_branch
      %24 = sbr.rel (0) target = $region9
    $region8: #{tpu_custom_call.1} parent=1 // pred_region
      %s26 = ssub.s32 2048, 2048
      %27 = vsyncadd [#allocation7], %s26
      %s28 = sshll.u32 [#allocation6], 4
      %s29 = int_to_ptr.vmem [resolvable:$true] %s28
      %34 = dma.hbm_to_vmem [thread:$0]  %s1, 2048, %s29, [#allocation7], 128, 128, 8
    $region9: #{tpu_custom_call.1} parent=1 // pred_fallthru
      _
    // Predicated region
    $region10: #{tpu_custom_call.1} parent=1 // pred_check
      _
    $region11: #{tpu_custom_call.1} parent=1 // pred_check_branch
      %36 = sbr.rel (0) target = $region13
    $region12: #{tpu_custom_call.1} parent=1 // pred_region
      _
    $region13: #{tpu_custom_call.1} parent=1 // pred_fallthru
      _
    // Predicated region
    $region14: #{tpu_custom_call.1} parent=1 // pred_check
      _
    $region15: #{tpu_custom_call.1} parent=1 // pred_check_branch
      %38 = sbr.rel (0) target = $region17
    $region16: #{tpu_custom_call.1} parent=1 // pred_region
      %39 = dma.done [#allocation4], 64
    $region17: #{tpu_custom_call.1} parent=1 // pred_fallthru
      _
    // Predicated region
    $region18: #{tpu_custom_call.1} parent=1 // pred_check
      _
    $region19: #{tpu_custom_call.1} parent=1 // pred_check_branch
      %41 = sbr.rel (0) target = $region21
    $region20: #{tpu_custom_call.1} parent=1 // pred_region
      %42 = dma.done [#allocation7], 2048
    $region21: #{tpu_custom_call.1} parent=1 // pred_fallthru
      _
    %p43 = scmp.eq.s32.totalorder 0, 0
    // Predicated region
    $region22: #{tpu_custom_call.1} parent=1 // pred_check
      %p44 = pneg %p43
    $region23: #{tpu_custom_call.1} parent=1 // pred_check_branch
      %46 = sbr.rel (%p44) target = $region25
    $region24: #{tpu_custom_call.1} parent=1 // pred_region
      %47 = vst [vmem:[#allocation2] sm:$0x3] 0.0
    $region25: #{tpu_custom_call.1} parent=1 // pred_fallthru
      _
    %v48 = vld [vmem:[#allocation2] sm:$0x3]
    %v49 = vld [vmem:[#allocation3] sm:$0x3]
    %v50 = vld [vmem:[#allocation3 + $0x2] sm:$0x3]
    %vm51 = vcmask 1041408
    %v52 = vsel %vm51, %v49, 0.0
    %v53 = vrot.slane %v52, 4
    %v54 = vadd.f32 %v52, %v53
    %v55 = vrot.slane %v54, 2
    %v56 = vadd.f32 %v54, %v55
    %v57 = vrot.slane %v56, 1
    %v58 = vadd.f32 %v56, %v57
    %v59 = vsel %vm51, %v50, 0.0
    %v60 = vrot.slane %v59, 4
    %v61 = vadd.f32 %v59, %v60
    %v62 = vrot.slane %v61, 2
    %v63 = vadd.f32 %v61, %v62
    %v64 = vrot.slane %v63, 1
    %v65 = vadd.f32 %v63, %v64
    %vm68 = vcmask 1041409
    %v69 = vsel %vm68, %v65, %v58
    %v71 = vadd.f32 %v48, %v69
    %72 = vst [vmem:[#allocation2] sm:$0x3] %v71
    // Predicated region
    $region26: #{tpu_custom_call.1} parent=1 // pred_check
      %p73 = pneg %p43
    $region27: #{tpu_custom_call.1} parent=1 // pred_check_branch
      %75 = sbr.rel (%p73) target = $region29
    $region28: #{tpu_custom_call.1} parent=1 // pred_region
      %v76 = vld [vmem:[#allocation2] sm:$0x3]
      %v77 = vld [vmem:[#allocation6] sm:$0xff]
      %v78 = vld [vmem:[#allocation6 + $0x8] sm:$0xff]
      %v79 = vld [vmem:[#allocation6 + $0x10] sm:$0xff]
      %v80 = vld [vmem:[#allocation6 + $0x18] sm:$0xff]
      %v81 = vld [vmem:[#allocation6 + $0x20] sm:$0xff]
      %v82 = vld [vmem:[#allocation6 + $0x28] sm:$0xff]
      %v83 = vld [vmem:[#allocation6 + $0x30] sm:$0xff]
      %v84 = vld [vmem:[#allocation6 + $0x38] sm:$0xff]
      %v85 = vld [vmem:[#allocation6 + $0x40] sm:$0xff]
      %v86 = vld [vmem:[#allocation6 + $0x48] sm:$0xff]
      %v87 = vld [vmem:[#allocation6 + $0x50] sm:$0xff]
      %v88 = vld [vmem:[#allocation6 + $0x58] sm:$0xff]
      %v89 = vld [vmem:[#allocation6 + $0x60] sm:$0xff]
      %v90 = vld [vmem:[#allocation6 + $0x68] sm:$0xff]
      %v91 = vld [vmem:[#allocation6 + $0x70] sm:$0xff]
      %v92 = vld [vmem:[#allocation6 + $0x78] sm:$0xff]
      %v93 = vld [vmem:[%s2] sm:$0x1]
      %v95 = vlaneseq
      %v96 = vshrl.u32 %v95, 7
      %v97 = vsub.s32 0, %v96
      %v98 = vrot.slane %v93, %v97
      %100 = vmatprep.subr.mxu0 0.0
      %101 = vmatpush1.msra.mxu0 %v77
      %102 = vmatprep.subr.mxu0 0.0
      %103 = vmatpush1.msra.mxu0 %v78
      %104 = vmatprep.subr.mxu0 0.0
      %105 = vmatpush1.msra.mxu0 %v79
      %106 = vmatprep.subr.mxu0 0.0
      %107 = vmatpush1.msra.mxu0 %v80
      %108 = vmatprep.subr.mxu0 0.0
      %109 = vmatpush1.msra.mxu0 %v81
      %110 = vmatprep.subr.mxu0 0.0
      %111 = vmatpush1.msra.mxu0 %v82
      %112 = vmatprep.subr.mxu0 0.0
      %113 = vmatpush1.msra.mxu0 %v83
      %114 = vmatprep.subr.mxu0 0.0
      %115 = vmatpush1.msra.mxu0 %v84
      %116 = vmatprep.subr.mxu0 0.0
      %117 = vmatpush1.msra.mxu0 %v85
      %118 = vmatprep.subr.mxu0 0.0
      %119 = vmatpush1.msra.mxu0 %v86
      %120 = vmatprep.subr.mxu0 0.0
      %121 = vmatpush1.msra.mxu0 %v87
      %122 = vmatprep.subr.mxu0 0.0
      %123 = vmatpush1.msra.mxu0 %v88
      %124 = vmatprep.subr.mxu0 0.0
      %125 = vmatpush1.msra.mxu0 %v89
      %126 = vmatprep.subr.mxu0 0.0
      %127 = vmatpush1.msra.mxu0 %v90
      %128 = vmatprep.subr.mxu0 0.0
      %129 = vmatpush1.msra.mxu0 %v91
      %130 = vmatprep.subr.mxu0 0.0
      %131 = vmatpush1.msra.mxu0 %v92
      %132 = vmatprep.subr.mxu0 0.0
      %133 = vmatpush1.msra.mxu0 0.0
      %134 = vmatprep.subr.mxu0 0.0
      %135 = vmatpush1.msra.mxu0 0.0
      %136 = vmatprep.subr.mxu0 0.0
      %137 = vmatpush1.msra.mxu0 0.0
      %138 = vmatprep.subr.mxu0 0.0
      %139 = vmatpush1.msra.mxu0 0.0
      %140 = vmatprep.subr.mxu0 0.0
      %141 = vmatpush1.msra.mxu0 0.0
      %142 = vmatprep.subr.mxu0 0.0
      %143 = vmatpush1.msra.mxu0 0.0
      %144 = vmatprep.subr.mxu0 0.0
      %145 = vmatpush1.msra.mxu0 0.0
      %146 = vmatprep.subr.mxu0 0.0
      %147 = vmatpush1.msra.mxu0 0.0
      %148 = vmatprep.subr.mxu0 0.0
      %149 = vmatpush1.msra.mxu0 0.0
      %150 = vmatprep.subr.mxu0 0.0
      %151 = vmatpush1.msra.mxu0 0.0
      %152 = vmatprep.subr.mxu0 0.0
      %153 = vmatpush1.msra.mxu0 0.0
      %154 = vmatprep.subr.mxu0 0.0
      %155 = vmatpush1.msra.mxu0 0.0
      %156 = vmatprep.subr.mxu0 0.0
      %157 = vmatpush1.msra.mxu0 0.0
      %158 = vmatprep.subr.mxu0 0.0
      %159 = vmatpush1.msra.mxu0 0.0
      %160 = vmatprep.subr.mxu0 0.0
      %161 = vmatpush1.msra.mxu0 0.0
      %162 = vmatprep.subr.mxu0 0.0
      %163 = vmatpush1.msra.mxu0 0.0
      %164 = vmatprep.mubr.f32.mxu0 0.0
      %165 = vmatmul.mubr.f32.gmra.mrb[0].mxu0 %v76
      %v166 = vpop.f32.mrb[0].mxu0
      %v167 = vadd.f32 %v98, %v166
      %v168 = vpop.f32.mrb[0].mxu0
      %169 = vdwg.mxu0
      %v170 = vsel %vm51, %v167, -inf
      %171 = vmax.xlane.f32.xlu0 %v170
      %v172 = vpop.xlane.xlu0 %171
      %v173 = vsub.f32 %v167, %v172
      %v174 = vmul.f32 %v173, 1.442695
      %v175 = vpow.pop %v174
      %v176 = vsel %vm51, %v175, 0.0
      %177 = vadd.xlane.f32.xlu0 %v176
      %v178 = vpop.xlane.xlu0 %177
      %v179 = vrcp.pop %v178
      %v180 = vmul.f32 %v175, %v179
      %181 = vst [vmem:[#allocation8] sm:$0x3] %v180
    $region29: #{tpu_custom_call.1} parent=1 // pred_fallthru
      _
    // Predicated region
    $region30: #{tpu_custom_call.1} parent=1 // pred_check
      _
    $region31: #{tpu_custom_call.1} parent=1 // pred_check_branch
      %183 = sbr.rel (0) target = $region33
    $region32: #{tpu_custom_call.1} parent=1 // pred_region
      %s185 = ssub.s32 32, 32
      %186 = vsyncadd [#allocation5], %s185
      %s188 = sshll.u32 [#allocation8], 4
      %s189 = int_to_ptr.vmem [resolvable:$true] %s188
      %191 = dma.vmem_to_hbm [thread:$0]  %s189, 32, %s3, [#allocation5]
    $region33: #{tpu_custom_call.1} parent=1 // pred_fallthru
      _
    // Predicated region
    $region34: #{tpu_custom_call.1} parent=1 // pred_check
      _
    $region35: #{tpu_custom_call.1} parent=1 // pred_check_branch
      %193 = sbr.rel (0) target = $region37
    $region36: #{tpu_custom_call.1} parent=1 // pred_region
      %194 = dma.done [#allocation5], 32
    $region37: #{tpu_custom_call.1} parent=1 // pred_fallthru
      _
    %195 = vsyncpa [#allocation4], 1
    %196 = vsyncpa [#allocation7], 1
    %197 = vsyncpa [#allocation5], 1

</llo_original>
